<compile_context>
chip_gen: v6e
topology: v6e:2x2x1
jax: 0.10.0
libtpu: 0.0.40
codegen_flags: <defaults>
</compile_context>

<pallas_src>
import functools

import jax
import jax.numpy as jnp
from jax.experimental import pallas as pl
from jax.experimental.pallas import tpu as pltpu


# ------------------------------ helpers ------------------------------------ #
def _round_up(v, m):
    return ((v + m - 1) // m) * m


def _largest_divisor_leq(n, cap):
    cap = max(1, min(n, cap))
    for d in range(cap, 0, -1):
        if n % d == 0:
            return d
    return 1


def _vmem_capacity_bytes():
    try:
        cap = getattr(pltpu.get_tpu_info(), "vmem_capacity_bytes", None)
        if cap:
            return int(cap)
    except Exception:
        pass
    return 128 << 20  # v5e/v6e-like default


# ----------------------------- Pallas kernel ------------------------------- #
def _gdn_kernel(x_ref, gamma_ref, beta_ref, o_ref, *,
                inverse: bool, mask_tail: bool, hw: int, tpix: int, bn: int,
                compute_dtype):
    # x_ref/o_ref: (Bn, C, TPIX) lane-dense pixel tiles
    # gamma_ref:   (C, C)  resident, un-transposed (MXU lhs)
    # beta_ref:    (C, 1)  f32, broadcast over pixels
    gamma = gamma_ref[...]
    beta = beta_ref[...]

    if mask_tail:
        # Ragged final pixel tile: zero the garbage lanes before squaring so
        # no NaN/Inf ever enters the matmul; OOB lanes of the store are
        # discarded by Pallas anyway.
        valid = hw - pl.program_id(1) * tpix
        lane = jax.lax.broadcasted_iota(jnp.int32, (x_ref.shape[1], tpix), 1)
        keep = lane < valid

    for b in range(bn):  # Bn is small & static; amortizes grid-step overhead
        xb = x_ref[b].astype(jnp.float32)                  # (C, TPIX)
        if mask_tail:
            xb = jnp.where(keep, xb, 0.0)
        xsq = (xb * xb).astype(compute_dtype)
        # norm[i,p] = beta[i] + sum_j gamma[i,j] * x[j,p]^2
        norm = jnp.dot(gamma, xsq, preferred_element_type=jnp.float32) + beta
        if inverse:
            scale = jnp.sqrt(norm)            # IGDN
        else:
            scale = jax.lax.rsqrt(norm)       # GDN: EUP op, hidden under MXU
        o_ref[b] = (xb * scale).astype(o_ref.dtype)


# ------------------------------ wrapper ------------------------------------ #
def gdn_pallas(x_nchw, gamma, beta, *, inverse: bool,
               target_tpix: int | None = None, mxu_dtype=None):
    """GDN forward directly on an NCHW tensor (no pads, no layout transposes).

    x_nchw: (N, C, H, W); gamma: (C, C); beta: (C,). Returns (N, C, H, W).
    """
    N, C, H, W = x_nchw.shape
    hw = H * W
    x_item = jnp.dtype(x_nchw.dtype).itemsize

    # ---- generation-aware knobs ----
    vmem_cap = _vmem_capacity_bytes()
    small_vmem = vmem_cap <= (64 << 20)          # v7x-like: 64 MiB physical
    if target_tpix is None:
        target_tpix = 2048 if small_vmem else 1024

    # ---- pixel tile selection (no pad / no output slice) ----
    hw128 = _round_up(hw, 128)
    if hw <= max(target_tpix, 128):
        tpix = hw                                # full pixel axis: always legal
    else:
        tpix = 0
        if hw % 128 == 0:                        # prefer an exact 128-mult divisor
            d = (target_tpix // 128) * 128
            while d >= 128:
                if hw % d == 0:
                    tpix = d
                    break
                d -= 128
        if tpix < min(512, hw):                  # no (big enough) divisor: ragged tail
            tpix = min(_round_up(target_tpix, 128), hw128)
    mask_tail = (hw % tpix) != 0
    pixel_tiles = -(-hw // tpix)                 # cdiv

    # ---- images per block: amortize per-step overhead for small images ----
    bn_cap = max(1, target_tpix // _round_up(tpix, 128))
    bn = _largest_divisor_leq(N, bn_cap)
    if (N // bn) * pixel_tiles < 2 and bn > 1:
        bn = _largest_divisor_leq(N, bn // 2)    # keep >=2 grid steps (megacore)
    batch_tiles = N // bn
    grid = (batch_tiles, pixel_tiles)

    # ---- dtypes: bf16 MXU inputs only when the activations are bf16 ----
    if mxu_dtype is None:
        compute_dtype = jnp.bfloat16 if x_nchw.dtype == jnp.bfloat16 else jnp.float32
    else:
        compute_dtype = mxu_dtype
    gamma = gamma.astype(compute_dtype)
    beta2d = beta.reshape(C, 1).astype(jnp.float32)

    # (N, C, H, W) -> (N, C, H*W): contiguous reshape, zero extra HBM traffic.
    x3 = x_nchw.reshape(N, C, hw)

    # ---- VMEM budget: double-buffered x/out tiles + params, gen-aware cap ----
    tile_bytes = bn * C * _round_up(tpix, 128) * x_item
    param_bytes = C * C * jnp.dtype(compute_dtype).itemsize + C * 128 * 4
    needed = 2 * 2 * tile_bytes + 2 * param_bytes
    vmem_ceiling = (48 << 20) if small_vmem else (100 << 20)
    vmem_limit = int(max(32 << 20, min(needed + (8 << 20), vmem_ceiling)))

    kernel = functools.partial(
        _gdn_kernel, inverse=inverse, mask_tail=mask_tail,
        hw=hw, tpix=tpix, bn=bn, compute_dtype=compute_dtype)

    out = pl.pallas_call(
        kernel,
        out_shape=jax.ShapeDtypeStruct((N, C, hw), x_nchw.dtype),
        grid_spec=pltpu.PrefetchScalarGridSpec(
            num_scalar_prefetch=0,
            grid=grid,
            in_specs=[
                pl.BlockSpec((bn, C, tpix), lambda n, p: (n, 0, p)),  # x tile
                pl.BlockSpec((C, C), lambda n, p: (0, 0)),            # gamma
                pl.BlockSpec((C, 1), lambda n, p: (0, 0)),            # beta
            ],
            out_specs=pl.BlockSpec((bn, C, tpix), lambda n, p: (n, 0, p)),
        ),
        compiler_params=pltpu.CompilerParams(
            dimension_semantics=("parallel", "parallel"),
            vmem_limit_bytes=vmem_limit,
        ),
        cost_estimate=pl.CostEstimate(
            flops=2 * N * hw * C * C,
            transcendentals=N * hw * C,
            bytes_accessed=2 * N * C * hw * x_item
            + C * C * jnp.dtype(compute_dtype).itemsize + C * 4,
        ),
    )(x3, gamma, beta2d)

    return out.reshape(N, C, H, W)


# --------------------------- Parameter setup (glue) ------------------------- #
_REPARAM_OFFSET = 2.0 ** (-18)
_PEDESTAL = _REPARAM_OFFSET ** 2


def _nonneg_init(x):
    # NonNegativeParametrizer.init: sqrt(max(x + pedestal, pedestal))
    return jnp.sqrt(jnp.maximum(x + _PEDESTAL, _PEDESTAL))


def _nonneg_forward(x, minimum=0.0):
    # NonNegativeParametrizer.forward: lower_bound(x)^2 - pedestal
    # TODO(synk): the custom LowerBound straight-through gradient is
    # training-only; forward is just max(x, bound).
    bound = (minimum + _PEDESTAL) ** 0.5
    out = jnp.maximum(x, bound)
    return out * out - _PEDESTAL


def make_gdn_params(in_channels, beta_min=1e-6, gamma_init=0.1):
    # Deterministic init matching GDN.__init__
    beta_param = _nonneg_init(jnp.ones((in_channels,), jnp.float32))
    gamma_param = _nonneg_init(gamma_init * jnp.eye(in_channels, dtype=jnp.float32))
    return beta_param, gamma_param


def gdn_forward(x_nchw, beta_param, gamma_param, *, inverse=False, beta_min=1e-6,
                target_tpix=None):
    beta = _nonneg_forward(beta_param, minimum=beta_min)   # (C,)
    gamma = _nonneg_forward(gamma_param, minimum=0.0)      # (C, C)
    return gdn_pallas(x_nchw, gamma, beta, inverse=inverse, target_tpix=target_tpix)


# ----------------------------------- main ----------------------------------- #
if __name__ == "__main__":
    key = jax.random.PRNGKey(0)
    k1, k2 = jax.random.split(key)

    # Case 1: small power-of-two image (whole pixel axis per block, Bn-batched).
    N, C, H, W = 2, 4, 16, 16
    x = jax.random.normal(k1, (N, C, H, W), dtype=jnp.float32)
    beta_p, gamma_p = make_gdn_params(C)

    out = jax.block_until_ready(gdn_forward(x, beta_p, gamma_p, inverse=False))

    beta = _nonneg_forward(beta_p, minimum=1e-6)
    gamma = _nonneg_forward(gamma_p, minimum=0.0)
    norm_ref = jnp.einsum("ij,njhw->nihw", gamma, x * x) + beta[None, :, None, None]
    ref = x * jax.lax.rsqrt(norm_ref)
    assert jnp.allclose(out, ref, atol=1e-5, rtol=1e-5), "GDN mismatch vs reference"

    out_inv = jax.block_until_ready(gdn_forward(x, beta_p, gamma_p, inverse=True))
    ref_inv = x * jnp.sqrt(norm_ref)
    assert jnp.allclose(out_inv, ref_inv, atol=1e-5, rtol=1e-5), "IGDN mismatch"

    # Case 2: ragged pixel count (exercises the no-pad tail-masking path).
    N2, C2, H2, W2 = 2, 8, 16, 10
    x2 = jax.random.normal(k2, (N2, C2, H2, W2), dtype=jnp.float32)
    beta_p2, gamma_p2 = make_gdn_params(C2)
    out2 = jax.block_until_ready(
        gdn_forward(x2, beta_p2, gamma_p2, inverse=False, target_tpix=128))

    beta2 = _nonneg_forward(beta_p2, minimum=1e-6)
    gamma2 = _nonneg_forward(gamma_p2, minimum=0.0)
    norm2 = jnp.einsum("ij,njhw->nihw", gamma2, x2 * x2) + beta2[None, :, None, None]
    ref2 = x2 * jax.lax.rsqrt(norm2)
    assert jnp.allclose(out2, ref2, atol=1e-5, rtol=1e-5), "ragged-tail GDN mismatch"

    print("KERNEL_OK")
</pallas_src>

<mosaic_0001>
module attributes {stable_mosaic.version = 11 : i64} {
  func.func @_gdn_kernel(%arg0: i32, %arg1: i32, %arg2: memref<1x4x256xf32, #tpu.memory_space<vmem>>, %arg3: memref<4x4xf32, #tpu.memory_space<vmem>>, %arg4: memref<4x1xf32, #tpu.memory_space<vmem>>, %arg5: memref<1x4x256xf32, #tpu.memory_space<vmem>>) attributes {dimension_semantics = [#tpu.dimension_semantics<parallel>, #tpu.dimension_semantics<parallel>], iteration_bounds = array<i64: 2, 1>, scalar_prefetch = 0 : i64, scratch_operands = 0 : i64, tpu.core_type = #tpu.core_type<tc>, window_params = [{transform_indices = @transform_0, window_bounds = array<i64: 1, 4, 256>}, {pipeline_mode = #tpu.pipeline_mode<synchronous>, transform_indices = @transform_1, window_bounds = array<i64: 4, 4>}, {pipeline_mode = #tpu.pipeline_mode<synchronous>, transform_indices = @transform_2, window_bounds = array<i64: 4, 1>}, {transform_indices = @transform_3, window_bounds = array<i64: 1, 4, 256>}]} {
    %c0 = arith.constant 0 : index
    %c0_0 = arith.constant 0 : index
    %0 = vector.load %arg3[%c0, %c0_0] : memref<4x4xf32, #tpu.memory_space<vmem>>, vector<4x4xf32>
    %c0_1 = arith.constant 0 : index
    %c0_2 = arith.constant 0 : index
    %1 = vector.load %arg4[%c0_1, %c0_2] : memref<4x1xf32, #tpu.memory_space<vmem>>, vector<4x1xf32>
    %c0_3 = arith.constant 0 : index
    %c0_4 = arith.constant 0 : index
    %c0_5 = arith.constant 0 : index
    %2 = vector.load %arg2[%c0_3, %c0_4, %c0_5] : memref<1x4x256xf32, #tpu.memory_space<vmem>>, vector<1x4x256xf32>
    %3 = vector.shape_cast %2 : vector<1x4x256xf32> to vector<4x256xf32>
    %4 = arith.mulf %3, %3 : vector<4x256xf32>
    %cst = arith.constant dense<0.000000e+00> : vector<4x256xf32>
    %5 = tpu.matmul %0, %4, %cst {dimension_numbers = #tpu.dot_dimension_numbers<[1], [0], [0], [1], [0, 0, 1, 1], [], []>} : vector<4x4xf32>, vector<4x256xf32>, vector<4x256xf32> -> vector<4x256xf32>
    %6 = vector.broadcast %1 : vector<4x1xf32> to vector<4x256xf32>
    %7 = arith.addf %5, %6 : vector<4x256xf32>
    %8 = math.rsqrt %7 : vector<4x256xf32>
    %9 = arith.mulf %3, %8 : vector<4x256xf32>
    %c0_6 = arith.constant 0 : index
    %c0_7 = arith.constant 0 : index
    %c0_8 = arith.constant 0 : index
    %10 = vector.load %arg5[%c0_6, %c0_7, %c0_8] : memref<1x4x256xf32, #tpu.memory_space<vmem>>, vector<1x4x256xf32>
    %11 = vector.shape_cast %10 : vector<1x4x256xf32> to vector<4x256xf32>
    %12 = vector.shape_cast %9 : vector<4x256xf32> to vector<1x4x256xf32>
    tpu.vector_store %arg5[%c0_6, %c0_7, %c0_8], %12 {strides = array<i32>} : memref<1x4x256xf32, #tpu.memory_space<vmem>>, vector<1x4x256xf32>,
    return
  }
  func.func @transform_0(%arg0: i32, %arg1: i32) -> (i32, i32, i32) {
    %c0_i32 = arith.constant 0 : i32
    %c0_i32_0 = arith.constant 0 : i32
    return %arg0, %c0_i32, %arg1 : i32, i32, i32
  }
  func.func @transform_1(%arg0: i32, %arg1: i32) -> (i32, i32) {
    %c0_i32 = arith.constant 0 : i32
    %c0_i32_0 = arith.constant 0 : i32
    %c0_i32_1 = arith.constant 0 : i32
    return %c0_i32, %c0_i32_0 : i32, i32
  }
  func.func @transform_2(%arg0: i32, %arg1: i32) -> (i32, i32) {
    %c0_i32 = arith.constant 0 : i32
    %c0_i32_0 = arith.constant 0 : i32
    %c0_i32_1 = arith.constant 0 : i32
    return %c0_i32, %c0_i32_0 : i32, i32
  }
  func.func @transform_3(%arg0: i32, %arg1: i32) -> (i32, i32, i32) {
    %c0_i32 = arith.constant 0 : i32
    %c0_i32_0 = arith.constant 0 : i32
    return %arg0, %c0_i32, %arg1 : i32, i32, i32
  }
}

</mosaic_0001>

<llo_original>
// kernel: tpu_custom_call.1
$region0: #{tpu_custom_call.1}
  #allocation0 [shape = 'u32[]', space=smem, size = 0x4, offset = 0x4, fixed_abs, tag = 'smem constant byte address 0x4 - core index']
  #allocation1 [shape = 'u32[144,128]{1,0:T(1,128)}', space=vmem, size = 0x12000, scoped, tag = 'internal scratch']
  %s0 = inlined_call_operand.hbm [shape: f32[2,4,256], index: 0, kind: input, shape index: {}]
  %s1 = inlined_call_operand.vmem [shape: f32[4,4], index: 1, kind: input, shape index: {}]
  %s2 = inlined_call_operand.vmem [shape: f32[4,1], index: 2, kind: input, shape index: {}]
  %s3 = inlined_call_operand.hbm [shape: f32[2,4,256], index: 3, kind: output, shape index: {}]
  %s4 = sld [smem:[#allocation0]]
  $region49: #{tpu_custom_call.1} parent=0
    _
  %s6 = ssub.s32 1, %s4
  %s7 = scalar_select 0, %s6, %s4
  $region1: #{tpu_custom_call.1} parent=0
    #allocation2 [shape = 'u8[8192]{0}', space=vmem, size = 0x2000, scoped, tag = 'input window, operand 0']
    #allocation3 [shape = 's32[2]{0}', space=sflag, size = 0x8, scoped, tag = 'scoped memory for tpu_custom_call.1']
    #allocation4 [shape = 's32[2]{0}', space=sflag, size = 0x8, scoped, tag = 'scoped memory for tpu_custom_call.1']
    #allocation5 [shape = 'u8[8192]{0}', space=vmem, size = 0x2000, scoped, tag = 'output window, operand 0']
    %8 = vsyncpa [#allocation3], 0
    %s9 = scalar_lea.sflag [#allocation3], 1
    %10 = vsyncpa %s9, 0
    %11 = vsyncpa [#allocation4], 0
    %s12 = scalar_lea.sflag [#allocation4], 1
    %13 = vsyncpa %s12, 0
    loop: start=0, step=1, limit=4
    $region2: #{tpu_custom_call.1} parent=1 // loop_pre_header
      _
    $region3: #{tpu_custom_call.1} parent=1 // loop_header
      %s15 = sphi 0, %s19
      %p16 = scmp.ge.s32.totalorder %s15, 4
      %s22 = sphi 0, %s34
      %s23 = sphi 0, %s30
      %s24 = sphi 0, %s22
      %s25 = sphi 0, %s23
      %s26 = sphi 0, %s24
      %s27 = sphi 0, %s25
      %s39 = sphi 0, %s41
      %s42 = sphi 0, %s39
      %s43 = sphi 0, %s42
      %s59 = sphi 0, %s43
      %s63 = sphi 0, %s63
      %s65 = sphi 0, %s63
      %s66 = sphi 0, %s65
      %s80 = sphi 0, %s66
      %s84 = sphi 0, %s84
      %s86 = sphi 0, %s84
      %s87 = sphi 0, %s86
      %s101 = sphi 0, %s87
      %s109 = sphi 0, %s111
      %s112 = sphi 0, %s109
      %s113 = sphi 0, %s112
      %s129 = sphi 0, %s113
    $region4: #{tpu_custom_call.1} parent=1 // loop_header_branch
      %18 = sbr.rel (%p16) target = $region8
    $region5: #{tpu_custom_call.1} parent=1 // loop_body
      %s20 = ssub.s32 %s15, 1
      %s21 = ssub.s32 %s15, 2
      %s28 = sadd.s32 1, %s23
      %p29 = scmp.ge.s32.totalorder %s28, 1
      %s30 = scalar_select %p29, 0, %s28
      %s31 = sadd.s32 1, %s22
      %s32 = scalar_select %p29, %s31, %s22
      %p33 = scmp.ge.s32.totalorder %s32, 2
      %s34 = scalar_select %p33, 0, %s32
      %s35 = ssub.s32 %s22, %s34
      %s36 = ssub.s32 %s23, %s30
      %s37 = sor.u32 %s35, %s36
      %p38 = scmp.eq.s32.totalorder %s37, 0
      %s40 = sadd.s32 %s39, 1
      %s41 = scalar_select %p38, %s39, %s40
      %p44 = pneg %p38
      %p45 = scmp.eq.s32.totalorder %s15, 1
      %p46 = por %p44, %p45
      %p47 = scmp.ne.s32.totalorder %s39, %s42
      %p48 = scmp.eq.s32.totalorder %s15, 0
      %p49 = por %p47, %p48
      %p50 = scmp.ne.s32.totalorder %s39, %s42
      %p51 = scmp.eq.s32.totalorder %s20, 1
      %p52 = por %p50, %p51
      %p53 = scmp.ne.s32.totalorder %s42, %s43
      %p54 = scmp.eq.s32.totalorder %s20, 0
      %p55 = por %p53, %p54
      %p56 = scmp.ne.s32.totalorder %s42, %s43
      %p57 = scmp.eq.s32.totalorder %s21, 1
      %p58 = por %p56, %p57
      %p60 = scmp.ne.s32.totalorder %s43, %s59
      %p61 = scmp.eq.s32.totalorder %s21, 0
      %p62 = por %p60, %p61
      %s64 = sadd.s32 %s63, 1
      %p67 = scmp.eq.s32.totalorder %s15, 1
      %p68 = scmp.ne.s32.totalorder %s63, %s65
      %p69 = scmp.eq.s32.totalorder %s15, 0
      %p70 = por %p68, %p69
      %p71 = scmp.ne.s32.totalorder %s63, %s65
      %p72 = scmp.eq.s32.totalorder %s20, 1
      %p73 = por %p71, %p72
      %p74 = scmp.ne.s32.totalorder %s65, %s66
      %p75 = scmp.eq.s32.totalorder %s20, 0
      %p76 = por %p74, %p75
      %p77 = scmp.ne.s32.totalorder %s65, %s66
      %p78 = scmp.eq.s32.totalorder %s21, 1
      %p79 = por %p77, %p78
      %p81 = scmp.ne.s32.totalorder %s66, %s80
      %p82 = scmp.eq.s32.totalorder %s21, 0
      %p83 = por %p81, %p82
      %s85 = sadd.s32 %s84, 1
      %p88 = scmp.eq.s32.totalorder %s15, 1
      %p89 = scmp.ne.s32.totalorder %s84, %s86
      %p90 = scmp.eq.s32.totalorder %s15, 0
      %p91 = por %p89, %p90
      %p92 = scmp.ne.s32.totalorder %s84, %s86
      %p93 = scmp.eq.s32.totalorder %s20, 1
      %p94 = por %p92, %p93
      %p95 = scmp.ne.s32.totalorder %s86, %s87
      %p96 = scmp.eq.s32.totalorder %s20, 0
      %p97 = por %p95, %p96
      %p98 = scmp.ne.s32.totalorder %s86, %s87
      %p99 = scmp.eq.s32.totalorder %s21, 1
      %p100 = por %p98, %p99
      %p102 = scmp.ne.s32.totalorder %s87, %s101
      %p103 = scmp.eq.s32.totalorder %s21, 0
      %p104 = por %p102, %p103
      %s105 = ssub.s32 %s22, %s34
      %s106 = ssub.s32 %s23, %s30
      %s107 = sor.u32 %s105, %s106
      %p108 = scmp.eq.s32.totalorder %s107, 0
      %s110 = sadd.s32 %s109, 1
      %s111 = scalar_select %p108, %s109, %s110
      %p114 = pneg %p108
      %p115 = scmp.eq.s32.totalorder %s15, 1
      %p116 = por %p114, %p115
      %p117 = scmp.ne.s32.totalorder %s109, %s112
      %p118 = scmp.eq.s32.totalorder %s15, 0
      %p119 = por %p117, %p118
      %p120 = scmp.ne.s32.totalorder %s109, %s112
      %p121 = scmp.eq.s32.totalorder %s20, 1
      %p122 = por %p120, %p121
      %p123 = scmp.ne.s32.totalorder %s112, %s113
      %p124 = scmp.eq.s32.totalorder %s20, 0
      %p125 = por %p123, %p124
      %p126 = scmp.ne.s32.totalorder %s112, %s113
      %p127 = scmp.eq.s32.totalorder %s21, 1
      %p128 = por %p126, %p127
      %p130 = scmp.ne.s32.totalorder %s113, %s129
      %p131 = scmp.eq.s32.totalorder %s21, 0
      %p132 = por %p130, %p131
      %p133 = scmp.le.s32.totalorder 1, %s15
      %p134 = scmp.lt.s32.totalorder %s15, 3
      %p135 = pnand %p133, %p134
      %p136 = pneg %p135
      // Predicated region
      $region9: #{tpu_custom_call.1} parent=5 // pred_check
        _
      $region10: #{tpu_custom_call.1} parent=5 // pred_check_branch
        %138 = sbr.rel (%p135) target = $region12
      $region11: #{tpu_custom_call.1} parent=5 // pred_region
        %s139 = ssub.s32 %s15, 1
        // Predicated region
        $region13: #{tpu_custom_call.1} parent=11 // pred_check
          %p140 = pneg %p76
        $region14: #{tpu_custom_call.1} parent=11 // pred_check_branch
          %142 = sbr.rel (%p140) target = $region16
        $region15: #{tpu_custom_call.1} parent=11 // pred_region
          _
        $region16: #{tpu_custom_call.1} parent=11 // pred_fallthru
          _
        // Predicated region
        $region17: #{tpu_custom_call.1} parent=11 // pred_check
          %p143 = pneg %p97
        $region18: #{tpu_custom_call.1} parent=11 // pred_check_branch
          %145 = sbr.rel (%p143) target = $region20
        $region19: #{tpu_custom_call.1} parent=11 // pred_region
          _
        $region20: #{tpu_custom_call.1} parent=11 // pred_fallthru
          _
      $region12: #{tpu_custom_call.1} parent=5 // pred_fallthru
        _
      %p146 = scmp.lt.s32.totalorder %s15, 2
      // Predicated region
      $region21: #{tpu_custom_call.1} parent=5 // pred_check
        %p147 = pneg %p146
      $region22: #{tpu_custom_call.1} parent=5 // pred_check_branch
        %149 = sbr.rel (%p147) target = $region24
      $region23: #{tpu_custom_call.1} parent=5 // pred_region
        // Predicated region
        $region25: #{tpu_custom_call.1} parent=23 // pred_check
          %p150 = pneg %p49
        $region26: #{tpu_custom_call.1} parent=23 // pred_check_branch
          %152 = sbr.rel (%p150) target = $region28
        $region27: #{tpu_custom_call.1} parent=23 // pred_region
          %s153 = sand.u32 %s39, 1
          %s154 = scalar_lea.sflag [#allocation3], %s153
          %s155 = sand.u32 %s39, 1
          %s156 = smul.addr %s155, 8
          %s157 = scalar_lea.vmem [#allocation2], %s156
          %s158 = smul.u32 2, %s23
          %s160 = ssub.s32 128, 128
          %161 = vsyncadd %s154, %s160
          %s162 = smul.addr %s22, 2
          %s163 = sadd.s32 %s158, %s162
          %s164 = smul.addr %s163, 64
          %s165 = scalar_lea.hbm %s0, %s164
          %s167 = sshll.u32 %s157, 4
          %s168 = int_to_ptr.vmem [resolvable:$true] %s167
          %170 = dma.hbm_to_vmem [thread:$0]  %s165, 128, %s168, %s154
        $region28: #{tpu_custom_call.1} parent=23 // pred_fallthru
          _
      $region24: #{tpu_custom_call.1} parent=5 // pred_fallthru
        _
      %p171 = scmp.le.s32.totalorder 1, %s15
      %p172 = scmp.lt.s32.totalorder %s15, 3
      %p173 = pnand %p171, %p172
      %p174 = pneg %p173
      // Predicated region
      $region29: #{tpu_custom_call.1} parent=5 // pred_check
        _
      $region30: #{tpu_custom_call.1} parent=5 // pred_check_branch
        %176 = sbr.rel (%p173) target = $region32
      $region31: #{tpu_custom_call.1} parent=5 // pred_region
        %s177 = ssub.s32 %s15, 1
        %s178 = sand.u32 %s42, 1
        %s179 = scalar_lea.sflag [#allocation3], %s178
        %s180 = sand.u32 %s42, 1
        %s181 = smul.addr %s180, 8
        %s182 = scalar_lea.vmem [#allocation2], %s181
        // Predicated region
        $region33: #{tpu_custom_call.1} parent=31 // pred_check
          %p183 = pneg %p55
        $region34: #{tpu_custom_call.1} parent=31 // pred_check_branch
          %185 = sbr.rel (%p183) target = $region36
        $region35: #{tpu_custom_call.1} parent=31 // pred_region
          %186 = dma.done %s179, 128
        $region36: #{tpu_custom_call.1} parent=31 // pred_fallthru
          _
        %s187 = sand.u32 %s42, 1
        %s188 = scalar_lea.sflag [#allocation3], %s187
        %s189 = sand.u32 %s42, 1
        %s190 = smul.addr %s189, 8
        %s191 = scalar_lea.vmem [#allocation2], %s190
        %p192 = pneg %p55
        %p193 = pneg %p52
        %p194 = pneg %p76
        %p195 = pneg %p73
        %p196 = pneg %p97
        %p197 = pneg %p94
        %p198 = pneg %p125
        %p199 = pneg %p122
        %s200 = sand.u32 %s112, 1
        %s201 = scalar_lea.sflag [#allocation4], %s200
        %s202 = sand.u32 %s112, 1
        %s203 = smul.addr %s202, 8
        %s204 = scalar_lea.vmem [#allocation5], %s203
        %s205 = smul.u32 2, %s25
        %s206 = smul.u32 2, %s25
        %v207 = vld [vmem:[%s1] sm:$0xf]
        %v208 = vld [vmem:[%s2] sm:$0xf]
        %v209 = vld [vmem:[%s182] sm:$0xff]
        %v210 = vmul.f32 %v209, %v209
        %212 = vset.pattern.permute.xlu0 0
        %213 = vperm.xlu0 %212, %v208
        %v214 = vpop.permute.xlu0 %213
        %v217 = vcombine.high %v210, %v210
        %vm218 = vcmask 31744
        %v220 = vsel %vm218, %v207, 0
        %vm222 = vcmask 1043456
        %v223 = vsel %vm222, %v210, 0
        %v225 = vsel %vm222, %v217, 0
        %227 = vmatprep.subr.mxu0 0.0
        %228 = vmatpush1.msra.mxu0 0.0
        %229 = vmatprep.subr.mxu0 0.0
        %230 = vmatpush1.msra.mxu0 0.0
        %231 = vmatprep.subr.mxu0 0.0
        %232 = vmatpush1.msra.mxu0 0.0
        %233 = vmatprep.subr.mxu0 0.0
        %234 = vmatpush1.msra.mxu0 0.0
        %235 = vmatprep.subr.mxu0 0.0
        %236 = vmatpush1.msra.mxu0 0.0
        %237 = vmatprep.subr.mxu0 0.0
        %238 = vmatpush1.msra.mxu0 0.0
        %239 = vmatprep.subr.mxu0 0.0
        %240 = vmatpush1.msra.mxu0 0.0
        %241 = vmatprep.subr.mxu0 0.0
        %242 = vmatpush1.msra.mxu0 0.0
        %243 = vmatprep.subr.mxu0 0.0
        %244 = vmatpush1.msra.mxu0 0.0
        %245 = vmatprep.subr.mxu0 0.0
        %246 = vmatpush1.msra.mxu0 0.0
        %247 = vmatprep.subr.mxu0 0.0
        %248 = vmatpush1.msra.mxu0 0.0
        %249 = vmatprep.subr.mxu0 0.0
        %250 = vmatpush1.msra.mxu0 0.0
        %251 = vmatprep.subr.mxu0 0.0
        %252 = vmatpush1.msra.mxu0 0.0
        %253 = vmatprep.subr.mxu0 0.0
        %254 = vmatpush1.msra.mxu0 0.0
        %255 = vmatprep.subr.mxu0 0.0
        %256 = vmatpush1.msra.mxu0 0.0
        %257 = vmatprep.subr.mxu0 %v225
        %258 = vmatpush1.msra.mxu0 %v223
        %259 = vmatprep.subr.mxu0 0.0
        %260 = vmatpush2.msra.mxu0 0.0
        %261 = vmatprep.subr.mxu0 0.0
        %262 = vmatpush2.msra.mxu0 0.0
        %263 = vmatprep.subr.mxu0 0.0
        %264 = vmatpush2.msra.mxu0 0.0
        %265 = vmatprep.subr.mxu0 0.0
        %266 = vmatpush2.msra.mxu0 0.0
        %267 = vmatprep.subr.mxu0 0.0
        %268 = vmatpush2.msra.mxu0 0.0
        %269 = vmatprep.subr.mxu0 0.0
        %270 = vmatpush2.msra.mxu0 0.0
        %271 = vmatprep.subr.mxu0 0.0
        %272 = vmatpush2.msra.mxu0 0.0
        %273 = vmatprep.subr.mxu0 0.0
        %274 = vmatpush2.msra.mxu0 0.0
        %275 = vmatprep.subr.mxu0 0.0
        %276 = vmatpush2.msra.mxu0 0.0
        %277 = vmatprep.subr.mxu0 0.0
        %278 = vmatpush2.msra.mxu0 0.0
        %279 = vmatprep.subr.mxu0 0.0
        %280 = vmatpush2.msra.mxu0 0.0
        %281 = vmatprep.subr.mxu0 0.0
        %282 = vmatpush2.msra.mxu0 0.0
        %283 = vmatprep.subr.mxu0 0.0
        %284 = vmatpush2.msra.mxu0 0.0
        %285 = vmatprep.subr.mxu0 0.0
        %286 = vmatpush2.msra.mxu0 0.0
        %287 = vmatprep.subr.mxu0 0.0
        %288 = vmatpush2.msra.mxu0 0.0
        %289 = vmatprep.subr.mxu0 0.0
        %290 = vmatpush2.msra.mxu0 0.0
        %291 = vmatprep.mubr.f32.mxu0 0.0
        %292 = vmatmul.mubr.f32.gmra.mxu0 %v220
        %v293 = vpop.f32.mrf.mxu0
        %v294 = vadd.f32 %v214, %v293
        %v295 = vpop.f32.mrf.mxu0
        %v296 = vadd.f32 %v214, %v295
        %297 = vdwg.mxu0
        %v298 = vrsqrt.pop %v294
        %v299 = vrsqrt.pop %v296
        %v302 = vcombine.low %v298, %v299
        %v304 = vmul.f32 %v209, %v302
        %305 = vst [vmem:[%s204] sm:$0xff] %v304
        %s306 = sand.u32 %s112, 1
        %s307 = scalar_lea.sflag [#allocation4], %s306
        %s308 = sand.u32 %s112, 1
        %s309 = smul.addr %s308, 8
        %s310 = scalar_lea.vmem [#allocation5], %s309
        // Predicated region
        $region37: #{tpu_custom_call.1} parent=31 // pred_check
          %p311 = pneg %p122
        $region38: #{tpu_custom_call.1} parent=31 // pred_check_branch
          %313 = sbr.rel (%p311) target = $region40
        $region39: #{tpu_custom_call.1} parent=31 // pred_region
          %s314 = smul.u32 2, %s25
          %s316 = ssub.s32 128, 128
          %317 = vsyncadd %s307, %s316
          %s318 = smul.addr %s24, 2
          %s319 = sadd.s32 %s314, %s318
          %s320 = smul.addr %s319, 64
          %s321 = scalar_lea.hbm %s3, %s320
          %s323 = sshll.u32 %s310, 4
          %s324 = int_to_ptr.vmem [resolvable:$true] %s323
          %326 = dma.vmem_to_hbm [thread:$0]  %s324, 128, %s321, %s307
        $region40: #{tpu_custom_call.1} parent=31 // pred_fallthru
          _
      $region32: #{tpu_custom_call.1} parent=5 // pred_fallthru
        _
      %p327 = scmp.le.s32.totalorder 2, %s15
      // Predicated region
      $region41: #{tpu_custom_call.1} parent=5 // pred_check
        %p328 = pneg %p327
      $region42: #{tpu_custom_call.1} parent=5 // pred_check_branch
        %330 = sbr.rel (%p328) target = $region44
      $region43: #{tpu_custom_call.1} parent=5 // pred_region
        %s331 = ssub.s32 %s15, 2
        // Predicated region
        $region45: #{tpu_custom_call.1} parent=43 // pred_check
          %p332 = pneg %p128
        $region46: #{tpu_custom_call.1} parent=43 // pred_check_branch
          %334 = sbr.rel (%p332) target = $region48
        $region47: #{tpu_custom_call.1} parent=43 // pred_region
          %s335 = sand.u32 %s113, 1
          %s336 = scalar_lea.sflag [#allocation4], %s335
          %s337 = sand.u32 %s113, 1
          %s338 = smul.addr %s337, 8
          %s339 = scalar_lea.vmem [#allocation5], %s338
          %340 = dma.done %s336, 128
        $region48: #{tpu_custom_call.1} parent=43 // pred_fallthru
          _
      $region44: #{tpu_custom_call.1} parent=5 // pred_fallthru
        _
    $region6: #{tpu_custom_call.1} parent=1 // loop_footer
      %s19 = sadd.s32 1, %s15
    $region7: #{tpu_custom_call.1} parent=1 // loop_footer_branch
      %14 = sbr.rel target = $region3
    $region8: #{tpu_custom_call.1} parent=1 // loop_exit
      _
    %341 = vsyncpa [#allocation3], 1
    %s342 = scalar_lea.sflag [#allocation3], 1
    %343 = vsyncpa %s342, 1
    %344 = vsyncpa [#allocation4], 1
    %s345 = scalar_lea.sflag [#allocation4], 1
    %346 = vsyncpa %s345, 1

</llo_original>
